<compile_context>
chip_gen: v7x
topology: tpu7x:2x2x1
jax: 0.10.0
libtpu: 0.0.40
codegen_flags: <defaults>
</compile_context>

<pallas_src>
import jax
import jax.numpy as jnp
from jax import lax
from jax.experimental import pallas as pl
from jax.experimental.pallas import tpu as pltpu


def conv2d_add(x1_nchw, weight, bias, x2):
    """v1 = conv2d(x1, weight, bias); v2 = v1 + x2  (x2 shape (1, Wo))."""
    N, Cin, H, W = x1_nchw.shape
    Cout, Cin_w, KH, KW = weight.shape
    assert Cin == Cin_w
    Ho, Wo = H - KH + 1, W - KW + 1
    HW = H * W
    max_shift = (KH - 1) * W + (KW - 1)
    # lane-aligned padded flat length so every shifted-window read is in bounds
    HWp = ((HW + max_shift + 127) // 128) * 128
    K = KH * KW * Cin                      # true contraction length per batch
    KPAD = ((K + 7) // 8) * 8              # sublane-aligned per-batch K block

    # ---- cheap wrapper glue (no 9x im2col expansion, no NHWC transpose) ----
    x_flat = x1_nchw.reshape(N, Cin, HW).astype(jnp.float32)
    x_flat = jnp.pad(x_flat, ((0, 0), (0, 0), (0, HWp - HW)))

    # weight (Cout,Cin,KH,KW) -> (Cout, K) with col = (kh*KW+kw)*Cin + cin,
    # zero-pad K -> KPAD, then block-diagonal over batch for one fused matmul.
    w2d = jnp.transpose(weight, (0, 2, 3, 1)).reshape(Cout, K).astype(jnp.float32)
    w2d = jnp.pad(w2d, ((0, 0), (0, KPAD - K)))                 # (Cout, KPAD)
    w_big = jnp.kron(jnp.eye(N, dtype=jnp.float32), w2d)        # (N*Cout, N*KPAD)

    # bias + x2 pre-combined into a single additive (N*Cout, HW) term.
    # x2 (1, Wo) -> lane-dense (1, HW) row: value at flat col h*W + w is x2[0, w].
    x2_row = jnp.pad(x2.reshape(1, Wo).astype(jnp.float32), ((0, 0), (0, W - Wo)))
    x2_row = jnp.tile(x2_row, (1, H))                            # (1, HW)
    add_term = bias.reshape(Cout, 1).astype(jnp.float32) + x2_row  # (Cout, HW)
    add_term = jnp.tile(add_term, (N, 1))                        # (N*Cout, HW)

    def kernel(x_ref, w_ref, add_ref, o_ref):
        # x_ref   : (N, Cin, HWp)      flat spatial on lanes, whole batch
        # w_ref   : (N*Cout, N*KPAD)   block-diagonal fused weight
        # add_ref : (N*Cout, HW)       bias + x2
        # o_ref   : (N*Cout, HW)       sublane- & lane-dense output
        x = x_ref[...]                                           # (N, Cin, HWp)
        # Build the shifted-window RHS once (all XLU rotates up front).
        pieces = []
        for n in range(N):
            for kh in range(KH):
                for kw in range(KW):
                    s = kh * W + kw                              # static shift
                    pieces.append(x[n, :, s:s + HW])             # (Cin, HW)
            if KPAD > K:
                pieces.append(jnp.zeros((KPAD - K, HW), jnp.float32))
        rhs = jnp.concatenate(pieces, axis=0)                    # (N*KPAD, HW)
        # Single fused MXU matmul for the whole batch.
        acc = jnp.dot(w_ref[...], rhs,
                      preferred_element_type=jnp.float32)        # (N*Cout, HW)
        o_ref[...] = acc + add_ref[...]

    cost = pl.CostEstimate(
        flops=2 * N * Cout * K * HW,
        transcendentals=0,
        bytes_accessed=4 * (x_flat.size + w_big.size + add_term.size
                            + N * Cout * HW))

    out_full = pl.pallas_call(
        kernel,
        out_shape=jax.ShapeDtypeStruct((N * Cout, HW), jnp.float32),
        grid=(1,),
        in_specs=[
            pl.BlockSpec((N, Cin, HWp), lambda i: (0, 0, 0)),
            pl.BlockSpec((N * Cout, N * KPAD), lambda i: (0, 0)),
            pl.BlockSpec((N * Cout, HW), lambda i: (0, 0)),
        ],
        out_specs=pl.BlockSpec((N * Cout, HW), lambda i: (0, 0)),
        cost_estimate=cost,
    )(x_flat, w_big, add_term)

    # (N*Cout, H*W) is already NCHW-major: reshape + valid-window slice,
    # no final transpose.
    return out_full.reshape(N, Cout, H, W)[:, :, :Ho, :Wo]


if __name__ == "__main__":
    key = jax.random.PRNGKey(0)
    k_x1, k_x2, k_w, k_b = jax.random.split(key, 4)

    # Small, non-degenerate shapes consistent with the module structure.
    N, Cin, H, W = 2, 3, 16, 16
    Cout, KH, KW = 4, 3, 3
    Ho, Wo = H - KH + 1, W - KW + 1

    x1 = jax.random.normal(k_x1, (N, Cin, H, W), dtype=jnp.float32)
    x2 = jax.random.normal(k_x2, (1, Wo), dtype=jnp.float32)

    # Deterministic parameter init (Conv2d-like uniform fan-in bound).
    fan_in = Cin * KH * KW
    bound = 1.0 / (fan_in ** 0.5)
    weight = jax.random.uniform(k_w, (Cout, Cin, KH, KW),
                                minval=-bound, maxval=bound, dtype=jnp.float32)
    bias = jax.random.uniform(k_b, (Cout,),
                              minval=-bound, maxval=bound, dtype=jnp.float32)

    out = jax.block_until_ready(conv2d_add(x1, weight, bias, x2))

    # Reference check with plain JAX conv (NCHW, OIHW).
    ref = lax.conv_general_dilated(
        x1, weight, window_strides=(1, 1), padding="VALID",
        dimension_numbers=("NCHW", "OIHW", "NCHW"))
    ref = ref + bias.reshape(1, Cout, 1, 1) + x2.reshape(1, 1, 1, Wo)
    assert out.shape == (N, Cout, Ho, Wo)
    assert jnp.allclose(out, ref, atol=1e-4, rtol=1e-4)

    print("KERNEL_OK")
</pallas_src>

<mosaic_0001>
module attributes {stable_mosaic.version = 11 : i64} {
  func.func @kernel(%arg0: i32, %arg1: memref<2x3x384xf32, #tpu.memory_space<vmem>>, %arg2: memref<8x64xf32, #tpu.memory_space<vmem>>, %arg3: memref<8x256xf32, #tpu.memory_space<vmem>>, %arg4: memref<8x256xf32, #tpu.memory_space<vmem>>) attributes {dimension_semantics = [#tpu.dimension_semantics<arbitrary>], iteration_bounds = array<i64: 1>, scalar_prefetch = 0 : i64, scratch_operands = 0 : i64, tpu.core_type = #tpu.core_type<tc>, window_params = [{pipeline_mode = #tpu.pipeline_mode<synchronous>, transform_indices = @transform_0, window_bounds = array<i64: 2, 3, 384>}, {pipeline_mode = #tpu.pipeline_mode<synchronous>, transform_indices = @transform_1, window_bounds = array<i64: 8, 64>}, {pipeline_mode = #tpu.pipeline_mode<synchronous>, transform_indices = @transform_2, window_bounds = array<i64: 8, 256>}, {pipeline_mode = #tpu.pipeline_mode<synchronous>, transform_indices = @transform_3, window_bounds = array<i64: 8, 256>}]} {
    %c0 = arith.constant 0 : index
    %c0_0 = arith.constant 0 : index
    %c0_1 = arith.constant 0 : index
    %0 = vector.load %arg1[%c0, %c0_0, %c0_1] : memref<2x3x384xf32, #tpu.memory_space<vmem>>, vector<2x3x384xf32>
    %1 = vector.extract_strided_slice %0 {offsets = [0, 0, 0], sizes = [1, 3, 256], strides = [1, 1, 1]} : vector<2x3x384xf32> to vector<1x3x256xf32>
    %2 = vector.shape_cast %1 : vector<1x3x256xf32> to vector<3x256xf32>
    %3 = vector.extract_strided_slice %0 {offsets = [0, 0, 1], sizes = [1, 3, 256], strides = [1, 1, 1]} : vector<2x3x384xf32> to vector<1x3x256xf32>
    %4 = vector.shape_cast %3 : vector<1x3x256xf32> to vector<3x256xf32>
    %5 = vector.extract_strided_slice %0 {offsets = [0, 0, 2], sizes = [1, 3, 256], strides = [1, 1, 1]} : vector<2x3x384xf32> to vector<1x3x256xf32>
    %6 = vector.shape_cast %5 : vector<1x3x256xf32> to vector<3x256xf32>
    %7 = vector.extract_strided_slice %0 {offsets = [0, 0, 16], sizes = [1, 3, 256], strides = [1, 1, 1]} : vector<2x3x384xf32> to vector<1x3x256xf32>
    %8 = vector.shape_cast %7 : vector<1x3x256xf32> to vector<3x256xf32>
    %9 = vector.extract_strided_slice %0 {offsets = [0, 0, 17], sizes = [1, 3, 256], strides = [1, 1, 1]} : vector<2x3x384xf32> to vector<1x3x256xf32>
    %10 = vector.shape_cast %9 : vector<1x3x256xf32> to vector<3x256xf32>
    %11 = vector.extract_strided_slice %0 {offsets = [0, 0, 18], sizes = [1, 3, 256], strides = [1, 1, 1]} : vector<2x3x384xf32> to vector<1x3x256xf32>
    %12 = vector.shape_cast %11 : vector<1x3x256xf32> to vector<3x256xf32>
    %13 = vector.extract_strided_slice %0 {offsets = [0, 0, 32], sizes = [1, 3, 256], strides = [1, 1, 1]} : vector<2x3x384xf32> to vector<1x3x256xf32>
    %14 = vector.shape_cast %13 : vector<1x3x256xf32> to vector<3x256xf32>
    %15 = vector.extract_strided_slice %0 {offsets = [0, 0, 33], sizes = [1, 3, 256], strides = [1, 1, 1]} : vector<2x3x384xf32> to vector<1x3x256xf32>
    %16 = vector.shape_cast %15 : vector<1x3x256xf32> to vector<3x256xf32>
    %17 = vector.extract_strided_slice %0 {offsets = [0, 0, 34], sizes = [1, 3, 256], strides = [1, 1, 1]} : vector<2x3x384xf32> to vector<1x3x256xf32>
    %18 = vector.shape_cast %17 : vector<1x3x256xf32> to vector<3x256xf32>
    %cst = arith.constant 0.000000e+00 : f32
    %19 = vector.broadcast %cst : f32 to vector<5x256xf32>
    %20 = vector.extract_strided_slice %0 {offsets = [1, 0, 0], sizes = [1, 3, 256], strides = [1, 1, 1]} : vector<2x3x384xf32> to vector<1x3x256xf32>
    %21 = vector.shape_cast %20 : vector<1x3x256xf32> to vector<3x256xf32>
    %22 = vector.extract_strided_slice %0 {offsets = [1, 0, 1], sizes = [1, 3, 256], strides = [1, 1, 1]} : vector<2x3x384xf32> to vector<1x3x256xf32>
    %23 = vector.shape_cast %22 : vector<1x3x256xf32> to vector<3x256xf32>
    %24 = vector.extract_strided_slice %0 {offsets = [1, 0, 2], sizes = [1, 3, 256], strides = [1, 1, 1]} : vector<2x3x384xf32> to vector<1x3x256xf32>
    %25 = vector.shape_cast %24 : vector<1x3x256xf32> to vector<3x256xf32>
    %26 = vector.extract_strided_slice %0 {offsets = [1, 0, 16], sizes = [1, 3, 256], strides = [1, 1, 1]} : vector<2x3x384xf32> to vector<1x3x256xf32>
    %27 = vector.shape_cast %26 : vector<1x3x256xf32> to vector<3x256xf32>
    %28 = vector.extract_strided_slice %0 {offsets = [1, 0, 17], sizes = [1, 3, 256], strides = [1, 1, 1]} : vector<2x3x384xf32> to vector<1x3x256xf32>
    %29 = vector.shape_cast %28 : vector<1x3x256xf32> to vector<3x256xf32>
    %30 = vector.extract_strided_slice %0 {offsets = [1, 0, 18], sizes = [1, 3, 256], strides = [1, 1, 1]} : vector<2x3x384xf32> to vector<1x3x256xf32>
    %31 = vector.shape_cast %30 : vector<1x3x256xf32> to vector<3x256xf32>
    %32 = vector.extract_strided_slice %0 {offsets = [1, 0, 32], sizes = [1, 3, 256], strides = [1, 1, 1]} : vector<2x3x384xf32> to vector<1x3x256xf32>
    %33 = vector.shape_cast %32 : vector<1x3x256xf32> to vector<3x256xf32>
    %34 = vector.extract_strided_slice %0 {offsets = [1, 0, 33], sizes = [1, 3, 256], strides = [1, 1, 1]} : vector<2x3x384xf32> to vector<1x3x256xf32>
    %35 = vector.shape_cast %34 : vector<1x3x256xf32> to vector<3x256xf32>
    %36 = vector.extract_strided_slice %0 {offsets = [1, 0, 34], sizes = [1, 3, 256], strides = [1, 1, 1]} : vector<2x3x384xf32> to vector<1x3x256xf32>
    %37 = vector.shape_cast %36 : vector<1x3x256xf32> to vector<3x256xf32>
    %cst_2 = arith.constant 0.000000e+00 : f32
    %38 = vector.broadcast %cst_2 : f32 to vector<5x256xf32>
    %39 = tpu.concatenate %2, %4, %6, %8, %10, %12, %14, %16, %18, %19, %21, %23, %25, %27, %29, %31 in 0 : vector<3x256xf32>, vector<3x256xf32>, vector<3x256xf32>, vector<3x256xf32>, vector<3x256xf32>, vector<3x256xf32>, vector<3x256xf32>, vector<3x256xf32>, vector<3x256xf32>, vector<5x256xf32>, vector<3x256xf32>, vector<3x256xf32>, vector<3x256xf32>, vector<3x256xf32>, vector<3x256xf32>, vector<3x256xf32> -> vector<50x256xf32>
    %40 = tpu.concatenate %33, %35, %37, %38 in 0 : vector<3x256xf32>, vector<3x256xf32>, vector<3x256xf32>, vector<5x256xf32> -> vector<14x256xf32>
    %41 = tpu.concatenate %39, %40 in 0 : vector<50x256xf32>, vector<14x256xf32> -> vector<64x256xf32>
    %c0_3 = arith.constant 0 : index
    %c0_4 = arith.constant 0 : index
    %42 = vector.load %arg2[%c0_3, %c0_4] : memref<8x64xf32, #tpu.memory_space<vmem>>, vector<8x64xf32>
    %cst_5 = arith.constant dense<0.000000e+00> : vector<8x256xf32>
    %43 = tpu.matmul %42, %41, %cst_5 {dimension_numbers = #tpu.dot_dimension_numbers<[1], [0], [0], [1], [0, 0, 1, 1], [], []>} : vector<8x64xf32>, vector<64x256xf32>, vector<8x256xf32> -> vector<8x256xf32>
    %c0_6 = arith.constant 0 : index
    %c0_7 = arith.constant 0 : index
    %44 = vector.load %arg3[%c0_6, %c0_7] : memref<8x256xf32, #tpu.memory_space<vmem>>, vector<8x256xf32>
    %45 = arith.addf %43, %44 : vector<8x256xf32>
    %c0_8 = arith.constant 0 : index
    %c0_9 = arith.constant 0 : index
    %46 = vector.load %arg4[%c0_8, %c0_9] : memref<8x256xf32, #tpu.memory_space<vmem>>, vector<8x256xf32>
    tpu.vector_store %arg4[%c0_8, %c0_9], %45 {strides = array<i32>} : memref<8x256xf32, #tpu.memory_space<vmem>>, vector<8x256xf32>,
    return
  }
  func.func @transform_0(%arg0: i32) -> (i32, i32, i32) {
    %c0_i32 = arith.constant 0 : i32
    %c0_i32_0 = arith.constant 0 : i32
    %c0_i32_1 = arith.constant 0 : i32
    %c0_i32_2 = arith.constant 0 : i32
    return %c0_i32, %c0_i32_0, %c0_i32_1 : i32, i32, i32
  }
  func.func @transform_1(%arg0: i32) -> (i32, i32) {
    %c0_i32 = arith.constant 0 : i32
    %c0_i32_0 = arith.constant 0 : i32
    %c0_i32_1 = arith.constant 0 : i32
    return %c0_i32, %c0_i32_0 : i32, i32
  }
  func.func @transform_2(%arg0: i32) -> (i32, i32) {
    %c0_i32 = arith.constant 0 : i32
    %c0_i32_0 = arith.constant 0 : i32
    %c0_i32_1 = arith.constant 0 : i32
    return %c0_i32, %c0_i32_0 : i32, i32
  }
  func.func @transform_3(%arg0: i32) -> (i32, i32) {
    %c0_i32 = arith.constant 0 : i32
    %c0_i32_0 = arith.constant 0 : i32
    %c0_i32_1 = arith.constant 0 : i32
    return %c0_i32, %c0_i32_0 : i32, i32
  }
}

</mosaic_0001>

<llo_original>
// kernel: tpu_custom_call.1
$region0: #{tpu_custom_call.1}
  #allocation0 [shape = 'u32[]', space=smem, size = 0x4, offset = 0x4, fixed_abs, tag = 'smem constant byte address 0x4 - core index']
  #allocation1 [shape = 'u32[144,128]{1,0:T(1,128)}', space=vmem, size = 0x12000, scoped, tag = 'internal scratch']
  %s0 = inlined_call_operand.vmem [shape: f32[2,3,384], index: 0, kind: input, shape index: {}]
  %s1 = inlined_call_operand.vmem [shape: f32[8,64], index: 1, kind: input, shape index: {}]
  %s2 = inlined_call_operand.vmem [shape: f32[8,256], index: 2, kind: input, shape index: {}]
  %s3 = inlined_call_operand.hbm [shape: f32[8,256], index: 3, kind: output, shape index: {}]
  %s4 = sld [smem:[#allocation0]]
  $region22: #{tpu_custom_call.1} parent=0
    _
  %s6 = ssub.s32 1, %s4
  %s7 = scalar_select 0, %s6, %s4
  $region1: #{tpu_custom_call.1} parent=0
    #allocation2 [shape = 'u8[8192]{0}', space=vmem, size = 0x2000, scoped, tag = 'output window, operand 0, single buffered']
    #allocation3 [shape = 's32[1]{0}', space=sflag, size = 0x4, scoped, tag = 'scoped memory for tpu_custom_call.1']
    %8 = vsyncpa [#allocation3], 0
    // Predicated region
    $region2: #{tpu_custom_call.1} parent=1 // pred_check
      _
    $region3: #{tpu_custom_call.1} parent=1 // pred_check_branch
      %10 = sbr.rel (0) target = $region5
    $region4: #{tpu_custom_call.1} parent=1 // pred_region
      _
    $region5: #{tpu_custom_call.1} parent=1 // pred_fallthru
      _
    // Predicated region
    $region6: #{tpu_custom_call.1} parent=1 // pred_check
      _
    $region7: #{tpu_custom_call.1} parent=1 // pred_check_branch
      %12 = sbr.rel (0) target = $region9
    $region8: #{tpu_custom_call.1} parent=1 // pred_region
      _
    $region9: #{tpu_custom_call.1} parent=1 // pred_fallthru
      _
    // Predicated region
    $region10: #{tpu_custom_call.1} parent=1 // pred_check
      _
    $region11: #{tpu_custom_call.1} parent=1 // pred_check_branch
      %14 = sbr.rel (0) target = $region13
    $region12: #{tpu_custom_call.1} parent=1 // pred_region
      _
    $region13: #{tpu_custom_call.1} parent=1 // pred_fallthru
      _
    %v15 = vld [vmem:[%s0] sm:$0x77]
    %v16 = vld [vmem:[%s0 + $0x8] sm:$0x7]
    %v17 = vld [vmem:[%s0 + $0xc] sm:$0x77]
    %v18 = vld [vmem:[%s0 + $0x14] sm:$0x7]
    %v20 = vcombine.high %v15, %v15
    %v23 = vrot.slane %v15, 5
    %v24 = vrot.slane %v20, 5
    %v25 = vrot.slane %v16, 5
    %26 = vrot.lane.b32.xlu0 %v23, 127
    %v27 = vpop.permute.xlu0 %26
    %28 = vrot.lane.b32.xlu0 %v24, 127
    %v29 = vpop.permute.xlu0 %28
    %30 = vrot.lane.b32.xlu0 %v25, 127
    %v31 = vpop.permute.xlu0 %30
    %vm32 = vcmask 1039360
    %v33 = vsel %vm32, %v27, %v29
    %v34 = vsel %vm32, %v29, %v31
    %v37 = vrot.slane %v15, 2
    %v38 = vrot.slane %v20, 2
    %v39 = vrot.slane %v16, 2
    %40 = vrot.lane.b32.xlu0 %v37, 126
    %v41 = vpop.permute.xlu0 %40
    %42 = vrot.lane.b32.xlu0 %v38, 126
    %v43 = vpop.permute.xlu0 %42
    %44 = vrot.lane.b32.xlu0 %v39, 126
    %v45 = vpop.permute.xlu0 %44
    %vm46 = vcmask 1031168
    %v47 = vsel %vm46, %v41, %v43
    %v48 = vsel %vm46, %v43, %v45
    %v51 = vrot.slane %v15, 7
    %v52 = vrot.slane %v20, 7
    %v53 = vrot.slane %v16, 7
    %54 = vrot.lane.b32.xlu0 %v51, 112
    %v55 = vpop.permute.xlu0 %54
    %56 = vrot.lane.b32.xlu0 %v52, 112
    %v57 = vpop.permute.xlu0 %56
    %58 = vrot.lane.b32.xlu0 %v53, 112
    %v59 = vpop.permute.xlu0 %58
    %vm60 = vcmask 916480
    %v61 = vsel %vm60, %v55, %v57
    %v62 = vsel %vm60, %v57, %v59
    %v65 = vcombine.low %v15, %v15
    %v66 = vcombine.low %v16, %v16
    %67 = vrot.lane.b32.xlu0 %v65, 111
    %v68 = vpop.permute.xlu0 %67
    %69 = vrot.lane.b32.xlu0 %v15, 111
    %v70 = vpop.permute.xlu0 %69
    %71 = vrot.lane.b32.xlu0 %v66, 111
    %v72 = vpop.permute.xlu0 %71
    %vm73 = vcmask 908288
    %v74 = vsel %vm73, %v68, %v70
    %v75 = vsel %vm73, %v70, %v72
    %v78 = vrot.slane %v15, 1
    %v79 = vrot.slane %v20, 1
    %v80 = vrot.slane %v16, 1
    %81 = vrot.lane.b32.xlu0 %v78, 110
    %v82 = vpop.permute.xlu0 %81
    %83 = vrot.lane.b32.xlu0 %v79, 110
    %v84 = vpop.permute.xlu0 %83
    %85 = vrot.lane.b32.xlu0 %v80, 110
    %v86 = vpop.permute.xlu0 %85
    %vm87 = vcmask 900096
    %v88 = vsel %vm87, %v82, %v84
    %v89 = vsel %vm87, %v84, %v86
    %v92 = vrot.slane %v15, 6
    %v93 = vrot.slane %v20, 6
    %v94 = vrot.slane %v16, 6
    %95 = vrot.lane.b32.xlu0 %v92, 96
    %v96 = vpop.permute.xlu0 %95
    %97 = vrot.lane.b32.xlu0 %v93, 96
    %v98 = vpop.permute.xlu0 %97
    %99 = vrot.lane.b32.xlu0 %v94, 96
    %v100 = vpop.permute.xlu0 %99
    %vm101 = vcmask 785408
    %v102 = vsel %vm101, %v96, %v98
    %v103 = vsel %vm101, %v98, %v100
    %v106 = vrot.slane %v15, 3
    %v107 = vrot.slane %v20, 3
    %v108 = vrot.slane %v16, 3
    %109 = vrot.lane.b32.xlu0 %v106, 95
    %v110 = vpop.permute.xlu0 %109
    %111 = vrot.lane.b32.xlu0 %v107, 95
    %v112 = vpop.permute.xlu0 %111
    %113 = vrot.lane.b32.xlu0 %v108, 95
    %v114 = vpop.permute.xlu0 %113
    %vm115 = vcmask 777216
    %v116 = vsel %vm115, %v110, %v112
    %v117 = vsel %vm115, %v112, %v114
    %120 = vrot.lane.b32.xlu0 %v15, 94
    %v121 = vpop.permute.xlu0 %120
    %122 = vrot.lane.b32.xlu0 %v20, 94
    %v123 = vpop.permute.xlu0 %122
    %124 = vrot.lane.b32.xlu0 %v16, 94
    %v125 = vpop.permute.xlu0 %124
    %vm126 = vcmask 769024
    %v127 = vsel %vm126, %v121, %v123
    %v128 = vsel %vm126, %v123, %v125
    %v132 = vcombine.high %v17, %v17
    %v135 = vrot.slane %v17, 5
    %v136 = vrot.slane %v132, 5
    %v137 = vrot.slane %v18, 5
    %138 = vrot.lane.b32.xlu0 %v135, 127
    %v139 = vpop.permute.xlu0 %138
    %140 = vrot.lane.b32.xlu0 %v136, 127
    %v141 = vpop.permute.xlu0 %140
    %142 = vrot.lane.b32.xlu0 %v137, 127
    %v143 = vpop.permute.xlu0 %142
    %v144 = vsel %vm32, %v139, %v141
    %v145 = vsel %vm32, %v141, %v143
    %v148 = vrot.slane %v17, 2
    %v149 = vrot.slane %v132, 2
    %v150 = vrot.slane %v18, 2
    %151 = vrot.lane.b32.xlu0 %v148, 126
    %v152 = vpop.permute.xlu0 %151
    %153 = vrot.lane.b32.xlu0 %v149, 126
    %v154 = vpop.permute.xlu0 %153
    %155 = vrot.lane.b32.xlu0 %v150, 126
    %v156 = vpop.permute.xlu0 %155
    %v157 = vsel %vm46, %v152, %v154
    %v158 = vsel %vm46, %v154, %v156
    %v161 = vrot.slane %v17, 7
    %v162 = vrot.slane %v132, 7
    %v163 = vrot.slane %v18, 7
    %164 = vrot.lane.b32.xlu0 %v161, 112
    %v165 = vpop.permute.xlu0 %164
    %166 = vrot.lane.b32.xlu0 %v162, 112
    %v167 = vpop.permute.xlu0 %166
    %168 = vrot.lane.b32.xlu0 %v163, 112
    %v169 = vpop.permute.xlu0 %168
    %v170 = vsel %vm60, %v165, %v167
    %v171 = vsel %vm60, %v167, %v169
    %v174 = vcombine.low %v17, %v17
    %v175 = vcombine.low %v18, %v18
    %176 = vrot.lane.b32.xlu0 %v174, 111
    %v177 = vpop.permute.xlu0 %176
    %178 = vrot.lane.b32.xlu0 %v17, 111
    %v179 = vpop.permute.xlu0 %178
    %180 = vrot.lane.b32.xlu0 %v175, 111
    %v181 = vpop.permute.xlu0 %180
    %v182 = vsel %vm73, %v177, %v179
    %v183 = vsel %vm73, %v179, %v181
    %v186 = vrot.slane %v17, 1
    %v187 = vrot.slane %v132, 1
    %v188 = vrot.slane %v18, 1
    %189 = vrot.lane.b32.xlu0 %v186, 110
    %v190 = vpop.permute.xlu0 %189
    %191 = vrot.lane.b32.xlu0 %v187, 110
    %v192 = vpop.permute.xlu0 %191
    %193 = vrot.lane.b32.xlu0 %v188, 110
    %v194 = vpop.permute.xlu0 %193
    %v195 = vsel %vm87, %v190, %v192
    %v196 = vsel %vm87, %v192, %v194
    %vm199 = vcmask 1042432
    %v200 = vsel %vm199, %v15, %v33
    %v201 = vsel %vm199, %v20, %v34
    %vm202 = vcmask 1045504
    %v203 = vsel %vm202, %v200, %v47
    %v204 = vsel %vm202, %v201, %v48
    %vm205 = vcmask 1040384
    %v206 = vsel %vm205, %v47, %v61
    %v207 = vsel %vm205, %v48, %v62
    %vm208 = vcmask 1043456
    %v209 = vsel %vm208, %v206, %v74
    %v210 = vsel %vm208, %v207, %v75
    %vm211 = vcmask 1046528
    %v212 = vsel %vm211, %v209, %v88
    %v213 = vsel %vm211, %v210, %v89
    %vm214 = vcmask 1041408
    %v215 = vsel %vm214, %v88, %v102
    %v216 = vsel %vm214, %v89, %v103
    %vm217 = vcmask 1044480
    %v218 = vsel %vm217, %v215, %v116
    %v219 = vsel %vm217, %v216, %v117
    %v220 = vsel %vm199, %v127, 0.0
    %v221 = vsel %vm199, %v128, 0.0
    %v222 = vsel %vm199, %v17, %v144
    %v223 = vsel %vm199, %v132, %v145
    %v224 = vsel %vm202, %v222, %v157
    %v225 = vsel %vm202, %v223, %v158
    %v226 = vsel %vm205, %v157, %v170
    %v227 = vsel %vm205, %v158, %v171
    %v228 = vsel %vm208, %v226, %v182
    %v229 = vsel %vm208, %v227, %v183
    %v230 = vsel %vm211, %v228, %v195
    %v231 = vsel %vm211, %v229, %v196
    %v234 = vsel %vm199, %v18, %v143
    %v235 = vsel %vm202, %v234, %v156
    %v236 = vsel %vm205, %v157, 0.0
    %v237 = vsel %vm205, %v158, 0.0
    %v238 = vsel %vm205, %v156, 0.0
    %v245 = vrot.slane %v224, 6
    %v246 = vrot.slane %v225, 6
    %v247 = vrot.slane %v235, 6
    %v248 = vrot.slane %v236, 6
    %v249 = vsel %vm214, %v245, %v248
    %v250 = vrot.slane %v237, 6
    %v251 = vsel %vm214, %v246, %v250
    %v252 = vrot.slane %v238, 6
    %v253 = vsel %vm214, %v247, %v252
    %254 = vrot.lane.b32.xlu0 %v245, 96
    %v255 = vpop.permute.xlu0 %254
    %256 = vrot.lane.b32.xlu0 %v246, 96
    %v257 = vpop.permute.xlu0 %256
    %258 = vrot.lane.b32.xlu0 %v247, 96
    %v259 = vpop.permute.xlu0 %258
    %260 = vrot.lane.b32.xlu0 %v249, 96
    %v261 = vpop.permute.xlu0 %260
    %262 = vrot.lane.b32.xlu0 %v251, 96
    %v263 = vpop.permute.xlu0 %262
    %264 = vrot.lane.b32.xlu0 %v253, 96
    %v265 = vpop.permute.xlu0 %264
    %v266 = vsel %vm101, %v255, %v257
    %v267 = vsel %vm101, %v257, %v259
    %v268 = vsel %vm101, %v261, %v263
    %v269 = vsel %vm101, %v263, %v265
    %v274 = vsel %vm214, %v195, %v266
    %v275 = vsel %vm214, %v196, %v267
    %v276 = vld [vmem:[%s1] sm:$0xff]
    %v277 = vld [vmem:[%s2] sm:$0xff]
    %v278 = vld [vmem:[%s2 + $0x8] sm:$0xff]
    %vm279 = vcmask 523264
    %v281 = vsel %vm279, %v276, 0
    %283 = vmatprep.subr.mxu0 %v204
    %284 = vmatpush1.msra.mxu0 %v203
    %285 = vmatprep.subr.mxu0 %v213
    %286 = vmatpush1.msra.mxu0 %v212
    %287 = vmatprep.subr.mxu0 %v219
    %288 = vmatpush1.msra.mxu0 %v218
    %289 = vmatprep.subr.mxu0 %v221
    %290 = vmatpush1.msra.mxu0 %v220
    %291 = vmatprep.subr.mxu0 %v225
    %292 = vmatpush1.msra.mxu0 %v224
    %293 = vmatprep.subr.mxu0 %v231
    %294 = vmatpush1.msra.mxu0 %v230
    %295 = vmatprep.subr.mxu0 %v275
    %296 = vmatpush1.msra.mxu0 %v274
    %297 = vmatprep.subr.mxu0 %v269
    %298 = vmatpush1.msra.mxu0 %v268
    %299 = vmatprep.subr.mxu0 0.0
    %300 = vmatpush1.msra.mxu0 0.0
    %301 = vmatprep.subr.mxu0 0.0
    %302 = vmatpush1.msra.mxu0 0.0
    %303 = vmatprep.subr.mxu0 0.0
    %304 = vmatpush1.msra.mxu0 0.0
    %305 = vmatprep.subr.mxu0 0.0
    %306 = vmatpush1.msra.mxu0 0.0
    %307 = vmatprep.subr.mxu0 0.0
    %308 = vmatpush1.msra.mxu0 0.0
    %309 = vmatprep.subr.mxu0 0.0
    %310 = vmatpush1.msra.mxu0 0.0
    %311 = vmatprep.subr.mxu0 0.0
    %312 = vmatpush1.msra.mxu0 0.0
    %313 = vmatprep.subr.mxu0 0.0
    %314 = vmatpush1.msra.mxu0 0.0
    %315 = vmatprep.subr.mxu0 0.0
    %316 = vmatpush1.msra.mxu0 0.0
    %317 = vmatprep.subr.mxu0 0.0
    %318 = vmatpush1.msra.mxu0 0.0
    %319 = vmatprep.subr.mxu0 0.0
    %320 = vmatpush1.msra.mxu0 0.0
    %321 = vmatprep.subr.mxu0 0.0
    %322 = vmatpush1.msra.mxu0 0.0
    %323 = vmatprep.subr.mxu0 0.0
    %324 = vmatpush1.msra.mxu0 0.0
    %325 = vmatprep.subr.mxu0 0.0
    %326 = vmatpush1.msra.mxu0 0.0
    %327 = vmatprep.subr.mxu0 0.0
    %328 = vmatpush1.msra.mxu0 0.0
    %329 = vmatprep.subr.mxu0 0.0
    %330 = vmatpush1.msra.mxu0 0.0
    %331 = vmatprep.subr.mxu0 0.0
    %332 = vmatpush1.msra.mxu0 0.0
    %333 = vmatprep.subr.mxu0 0.0
    %334 = vmatpush1.msra.mxu0 0.0
    %335 = vmatprep.subr.mxu0 0.0
    %336 = vmatpush1.msra.mxu0 0.0
    %337 = vmatprep.subr.mxu0 0.0
    %338 = vmatpush1.msra.mxu0 0.0
    %339 = vmatprep.subr.mxu0 0.0
    %340 = vmatpush1.msra.mxu0 0.0
    %341 = vmatprep.subr.mxu0 0.0
    %342 = vmatpush1.msra.mxu0 0.0
    %343 = vmatprep.subr.mxu0 0.0
    %344 = vmatpush1.msra.mxu0 0.0
    %345 = vmatprep.subr.mxu0 0.0
    %346 = vmatpush1.msra.mxu0 0.0
    %347 = vmatprep.mubr.f32.mxu0 0.0
    %348 = vmatmul.mubr.f32.gmra.mrb[0].mxu0 %v281
    %v349 = vpop.f32.mrb[0].mxu0
    %v350 = vadd.f32 %v277, %v349
    %v351 = vpop.f32.mrb[0].mxu0
    %v352 = vadd.f32 %v278, %v351
    %353 = vdwg.mxu0
    %354 = vst [vmem:[#allocation2] sm:$0xff] %v350
    %355 = vst [vmem:[#allocation2 + $0x8] sm:$0xff] %v352
    // Predicated region
    $region14: #{tpu_custom_call.1} parent=1 // pred_check
      _
    $region15: #{tpu_custom_call.1} parent=1 // pred_check_branch
      %357 = sbr.rel (0) target = $region17
    $region16: #{tpu_custom_call.1} parent=1 // pred_region
      %s359 = ssub.s32 256, 256
      %360 = vsyncadd [#allocation3], %s359
      %s362 = sshll.u32 [#allocation2], 4
      %s363 = int_to_ptr.vmem [resolvable:$true] %s362
      %365 = dma.vmem_to_hbm [thread:$0]  %s363, 256, %s3, [#allocation3]
    $region17: #{tpu_custom_call.1} parent=1 // pred_fallthru
      _
    // Predicated region
    $region18: #{tpu_custom_call.1} parent=1 // pred_check
      _
    $region19: #{tpu_custom_call.1} parent=1 // pred_check_branch
      %367 = sbr.rel (0) target = $region21
    $region20: #{tpu_custom_call.1} parent=1 // pred_region
      %368 = dma.done [#allocation3], 256
    $region21: #{tpu_custom_call.1} parent=1 // pred_fallthru
      _
    %369 = vsyncpa [#allocation3], 1

</llo_original>
